<compile_context>
chip_gen: v7x
topology: tpu7x:2x2x1
jax: 0.10.0
libtpu: 0.0.40
codegen_flags: <defaults>
</compile_context>

<pallas_src>
import math

import jax
import jax.numpy as jnp
from jax.experimental import pallas as pl
from jax.experimental.pallas import tpu as pltpu


def _join_kernel(w_ref, x_ref, o_ref):
    # w_ref: SMEM (P,) f32 weights (scalar prefetch)
    # x_ref: VMEM (P, TR, L) tile of the stacked paths (native dtype)
    # o_ref: VMEM (TR, L) f32 output tile
    # Accumulate in place (not a Python value chain) so internal VMEM scratch
    # stays ~one tile regardless of P; compute hides under the HBM DMA anyway.
    o_ref[...] = x_ref[0].astype(jnp.float32) * w_ref[0]
    for p in range(1, x_ref.shape[0]):          # unrolled FMA chain over paths
        o_ref[...] = o_ref[...] + x_ref[p].astype(jnp.float32) * w_ref[p]


def _vmem_capacity_bytes():
    """Physical VMEM of the local chip (generation-aware block sizing)."""
    try:
        cap = getattr(pltpu.get_tpu_info(), "vmem_capacity_bytes", None)
        if cap:
            return int(cap)
    except Exception:
        pass
    return 64 << 20          # conservative default = v7x physical VMEM


def _sublane_multiple(dtype):
    """Rows per packed vreg: 8 for f32, 16 for bf16, 32 for int8/fp8."""
    return max(8, 32 // jnp.dtype(dtype).itemsize)


def _pick_lane_width(n):
    """A multiple of 128 that divides n (prefer ~512 for lane-dense blocks)."""
    for cand in list(range(512, 4096 + 1, 128)) + [384, 256, 128]:
        if n % cand == 0:
            return cand
    return None


def _pick_block_rows(P, R, L, itemsize, sub, vmem_cap):
    """Biggest sublane-aligned row block that fits the per-generation VMEM
    budget, capped so the parallel grid keeps >= 2 steps (v7x megacore) and
    preferring an exact divisor of R (no masked partial trailing block)."""
    if R <= sub:
        return R                               # full extent -> always layout-legal
    # Live bytes per block row: 2x input buffers + 2x f32 output buffers
    # + ~1 f32 tile of internal scratch.  Spend ~60% of physical VMEM on it.
    budget = int(vmem_cap * 0.6)
    row_bytes = L * (2 * P * itemsize + 2 * 4 + 4)
    tr = max(sub, budget // row_bytes)
    tr = min(tr, -(-R // 2))                   # keep >= 2 grid steps
    tr = max(sub, (tr // sub) * sub)           # dtype-packed sublane alignment
    # Prefer an exact divisor of R so every step is full-sized and unmasked.
    for step in (sub, 8):
        for cand in range((tr // step) * step, step - 1, -step):
            if R % cand == 0:
                return cand
    return tr                                  # Pallas masks the trailing block


def _weighted_join(x3, weights):
    """x3: (P, R, L) array. weights: (P,) f32. Returns (R, L) f32 = sum_p w[p]*x3[p]."""
    P, R, L = x3.shape
    itemsize = jnp.dtype(x3.dtype).itemsize
    vmem_cap = _vmem_capacity_bytes()
    sub = _sublane_multiple(x3.dtype)
    tr = _pick_block_rows(P, R, L, itemsize, sub, vmem_cap)
    grid = pl.cdiv(R, tr)

    x_block = P * tr * L * itemsize
    o_block = tr * L * 4
    # 2x double-buffered input + 2x output + ~1 tile scratch + headroom, clamped
    # under physical VMEM (v5e's scoped default is only 16 MiB -> must be set).
    vmem_limit = int(min(vmem_cap * 0.9,
                         max(2 * x_block + 3 * o_block + (8 << 20), 32 << 20)))

    return pl.pallas_call(
        _join_kernel,
        out_shape=jax.ShapeDtypeStruct((R, L), jnp.float32),
        grid_spec=pltpu.PrefetchScalarGridSpec(
            num_scalar_prefetch=1,             # weights -> SMEM
            grid=(grid,),
            in_specs=[pl.BlockSpec((P, tr, L), lambda i, w: (0, i, 0))],
            out_specs=pl.BlockSpec((tr, L), lambda i, w: (i, 0)),
        ),
        compiler_params=pltpu.CompilerParams(
            dimension_semantics=("parallel",),  # megacore-shardable on v7x
            vmem_limit_bytes=vmem_limit),
    )(weights.astype(jnp.float32), x3)


def join_layer_forward(inputs, global_path, *, drop_p, is_global, force_path,
                       key=None):
    """JAX/Pallas equivalent of JoinLayer.forward.

    inputs: (P, B, C, H, W) stacked path outputs (any float dtype, kept native).
    global_path: (>=P,) learnable path weights.
    Returns float32 (B, C, H, W).
    """
    P = inputs.shape[0]
    out_shape = inputs.shape[1:]
    N = math.prod(out_shape)

    if is_global:
        # _mulLayer: mean over path axis of inputs * global_path[:P]
        w = global_path[:P].astype(jnp.float32) / float(P)
    elif force_path:
        # local drop-path: bernoulli(keep_p) per path; if all zero, pick one
        # path uniformly at random; normalize by number of kept paths.
        # TODO(synk): one mask for the whole batch, matching lib/fractallayer.py
        # (not the per-sample local drop of the original FractalNet paper).
        assert key is not None
        keep_p = 1.0 - drop_p
        kb, ki = jax.random.split(key)
        drops = jax.random.bernoulli(kb, keep_p, (P,)).astype(jnp.float32)
        idx = jax.random.randint(ki, (), 0, P)
        one_hot = (jnp.arange(P) == idx).astype(jnp.float32)
        drops = jnp.where(jnp.sum(drops) == 0.0, one_hot, drops)
        w = drops / jnp.sum(drops)
    else:
        # _ave: plain mean over paths
        w = jnp.full((P,), 1.0 / float(P), dtype=jnp.float32)

    x_flat = inputs.reshape(P, N)
    L = _pick_lane_width(N) if N % 128 == 0 else None
    if L is None:
        # N not a multiple of 128: pad the flat axis once (cheap HBM copy) so
        # every block stays lane-dense / unmasked, then slice the result back.
        L = 512
        n_pad = -(-N // L) * L
        x_flat = jnp.pad(x_flat, ((0, 0), (0, n_pad - N)))
    else:
        n_pad = N
    R = n_pad // L

    out = _weighted_join(x_flat.reshape(P, R, L), w)
    if n_pad != N:
        out = out.reshape(-1)[:N]
    return out.reshape(out_shape)


if __name__ == "__main__":
    key = jax.random.PRNGKey(0)
    k_x, k_gp, k_drop, k_odd = jax.random.split(key, 4)

    # small shapes consistent with the module: P=4 paths, batch=2, channels=4, 16x16
    P, B, C, H, W = 4, 2, 4, 16, 16
    inputs = jax.random.normal(k_x, (P, B, C, H, W), dtype=jnp.float32)

    # deterministic "learnable" global path weights (shape (P,), float32 as in __init__)
    global_path = jax.random.uniform(k_gp, (P,), dtype=jnp.float32)

    # global-join branch (is_global=True): out = mean_p(x[p] * global_path[p])
    out_global = jax.block_until_ready(join_layer_forward(
        inputs, global_path, drop_p=0.15, is_global=True, force_path=False))

    # local drop-path branch (force_path=True, is_global=False)
    out_local = jax.block_until_ready(join_layer_forward(
        inputs, global_path, drop_p=0.15, is_global=False, force_path=True,
        key=k_drop))

    # plain-average branch (_ave)
    out_ave = jax.block_until_ready(join_layer_forward(
        inputs, global_path, drop_p=0.15, is_global=False, force_path=False))

    # bf16 activations stay bf16 into the kernel (cast to f32 inside)
    out_bf16 = jax.block_until_ready(join_layer_forward(
        inputs.astype(jnp.bfloat16), global_path, drop_p=0.15,
        is_global=False, force_path=False))

    # N not divisible by 128 -> exercises the pad-and-slice path
    odd = jax.random.normal(k_odd, (3, 2, 3, 5, 7), dtype=jnp.float32)
    out_odd = jax.block_until_ready(join_layer_forward(
        odd, global_path, drop_p=0.15, is_global=False, force_path=False))

    # reference checks in plain JAX
    ref_global = jnp.mean(inputs * global_path[:, None, None, None, None], axis=0)
    ref_ave = jnp.mean(inputs, axis=0)
    ref_bf16 = jnp.mean(inputs.astype(jnp.bfloat16).astype(jnp.float32), axis=0)
    ref_odd = jnp.mean(odd, axis=0)

    assert out_global.shape == (B, C, H, W) and out_global.dtype == jnp.float32
    assert jnp.allclose(out_global, ref_global, atol=1e-5)
    assert jnp.allclose(out_ave, ref_ave, atol=1e-5)
    assert jnp.allclose(out_bf16, ref_bf16, atol=1e-4)
    assert out_odd.shape == (2, 3, 5, 7) and jnp.allclose(out_odd, ref_odd, atol=1e-5)
    assert out_local.shape == (B, C, H, W) and out_local.dtype == jnp.float32

    print("KERNEL_OK")
</pallas_src>

<mosaic_0001>
module attributes {stable_mosaic.version = 11 : i64} {
  func.func @_join_kernel(%arg0: i32, %arg1: memref<4xf32, #tpu.memory_space<smem>>, %arg2: memref<4x4x512xf32, #tpu.memory_space<vmem>>, %arg3: memref<4x512xf32, #tpu.memory_space<vmem>>) attributes {dimension_semantics = [#tpu.dimension_semantics<parallel>], iteration_bounds = array<i64: 1>, scalar_prefetch = 1 : i64, scratch_operands = 0 : i64, tpu.core_type = #tpu.core_type<tc>, window_params = [{transform_indices = @transform_0, window_bounds = array<i64: 4, 4, 512>}, {transform_indices = @transform_1, window_bounds = array<i64: 4, 512>}]} {
    %c0 = arith.constant 0 : index
    %c0_0 = arith.constant 0 : index
    %c0_1 = arith.constant 0 : index
    %0 = vector.load %arg2[%c0, %c0_0, %c0_1] : memref<4x4x512xf32, #tpu.memory_space<vmem>>, vector<1x4x512xf32>
    %1 = vector.shape_cast %0 : vector<1x4x512xf32> to vector<4x512xf32>
    %c0_2 = arith.constant 0 : index
    %2 = memref.load %arg1[%c0_2] : memref<4xf32, #tpu.memory_space<smem>>
    %3 = vector.broadcast %2 : f32 to vector<4x512xf32>
    %4 = arith.mulf %1, %3 : vector<4x512xf32>
    %c0_3 = arith.constant 0 : index
    %c0_4 = arith.constant 0 : index
    %5 = vector.load %arg3[%c0_3, %c0_4] : memref<4x512xf32, #tpu.memory_space<vmem>>, vector<4x512xf32>
    tpu.vector_store %arg3[%c0_3, %c0_4], %4 {strides = array<i32>} : memref<4x512xf32, #tpu.memory_space<vmem>>, vector<4x512xf32>,
    %c0_5 = arith.constant 0 : index
    %c0_6 = arith.constant 0 : index
    %6 = vector.load %arg3[%c0_5, %c0_6] : memref<4x512xf32, #tpu.memory_space<vmem>>, vector<4x512xf32>
    %c1 = arith.constant 1 : index
    %c0_7 = arith.constant 0 : index
    %c0_8 = arith.constant 0 : index
    %7 = vector.load %arg2[%c1, %c0_7, %c0_8] : memref<4x4x512xf32, #tpu.memory_space<vmem>>, vector<1x4x512xf32>
    %8 = vector.shape_cast %7 : vector<1x4x512xf32> to vector<4x512xf32>
    %c1_9 = arith.constant 1 : index
    %9 = memref.load %arg1[%c1_9] : memref<4xf32, #tpu.memory_space<smem>>
    %10 = vector.broadcast %9 : f32 to vector<4x512xf32>
    %11 = arith.mulf %8, %10 : vector<4x512xf32>
    %12 = arith.addf %6, %11 : vector<4x512xf32>
    %c0_10 = arith.constant 0 : index
    %c0_11 = arith.constant 0 : index
    %13 = vector.load %arg3[%c0_10, %c0_11] : memref<4x512xf32, #tpu.memory_space<vmem>>, vector<4x512xf32>
    tpu.vector_store %arg3[%c0_10, %c0_11], %12 {strides = array<i32>} : memref<4x512xf32, #tpu.memory_space<vmem>>, vector<4x512xf32>,
    %c0_12 = arith.constant 0 : index
    %c0_13 = arith.constant 0 : index
    %14 = vector.load %arg3[%c0_12, %c0_13] : memref<4x512xf32, #tpu.memory_space<vmem>>, vector<4x512xf32>
    %c2 = arith.constant 2 : index
    %c0_14 = arith.constant 0 : index
    %c0_15 = arith.constant 0 : index
    %15 = vector.load %arg2[%c2, %c0_14, %c0_15] : memref<4x4x512xf32, #tpu.memory_space<vmem>>, vector<1x4x512xf32>
    %16 = vector.shape_cast %15 : vector<1x4x512xf32> to vector<4x512xf32>
    %c2_16 = arith.constant 2 : index
    %17 = memref.load %arg1[%c2_16] : memref<4xf32, #tpu.memory_space<smem>>
    %18 = vector.broadcast %17 : f32 to vector<4x512xf32>
    %19 = arith.mulf %16, %18 : vector<4x512xf32>
    %20 = arith.addf %14, %19 : vector<4x512xf32>
    %c0_17 = arith.constant 0 : index
    %c0_18 = arith.constant 0 : index
    %21 = vector.load %arg3[%c0_17, %c0_18] : memref<4x512xf32, #tpu.memory_space<vmem>>, vector<4x512xf32>
    tpu.vector_store %arg3[%c0_17, %c0_18], %20 {strides = array<i32>} : memref<4x512xf32, #tpu.memory_space<vmem>>, vector<4x512xf32>,
    %c0_19 = arith.constant 0 : index
    %c0_20 = arith.constant 0 : index
    %22 = vector.load %arg3[%c0_19, %c0_20] : memref<4x512xf32, #tpu.memory_space<vmem>>, vector<4x512xf32>
    %c3 = arith.constant 3 : index
    %c0_21 = arith.constant 0 : index
    %c0_22 = arith.constant 0 : index
    %23 = vector.load %arg2[%c3, %c0_21, %c0_22] : memref<4x4x512xf32, #tpu.memory_space<vmem>>, vector<1x4x512xf32>
    %24 = vector.shape_cast %23 : vector<1x4x512xf32> to vector<4x512xf32>
    %c3_23 = arith.constant 3 : index
    %25 = memref.load %arg1[%c3_23] : memref<4xf32, #tpu.memory_space<smem>>
    %26 = vector.broadcast %25 : f32 to vector<4x512xf32>
    %27 = arith.mulf %24, %26 : vector<4x512xf32>
    %28 = arith.addf %22, %27 : vector<4x512xf32>
    %c0_24 = arith.constant 0 : index
    %c0_25 = arith.constant 0 : index
    %29 = vector.load %arg3[%c0_24, %c0_25] : memref<4x512xf32, #tpu.memory_space<vmem>>, vector<4x512xf32>
    tpu.vector_store %arg3[%c0_24, %c0_25], %28 {strides = array<i32>} : memref<4x512xf32, #tpu.memory_space<vmem>>, vector<4x512xf32>,
    return
  }
  func.func @transform_0(%arg0: i32, %arg1: memref<4xf32, #tpu.memory_space<smem>>) -> (i32, i32, i32) {
    %c0_i32 = arith.constant 0 : i32
    %c0_i32_0 = arith.constant 0 : i32
    %c0_i32_1 = arith.constant 0 : i32
    return %c0_i32, %arg0, %c0_i32_0 : i32, i32, i32
  }
  func.func @transform_1(%arg0: i32, %arg1: memref<4xf32, #tpu.memory_space<smem>>) -> (i32, i32) {
    %c0_i32 = arith.constant 0 : i32
    %c0_i32_0 = arith.constant 0 : i32
    return %arg0, %c0_i32 : i32, i32
  }
}

</mosaic_0001>

<llo_original>
// kernel: tpu_custom_call.1
$region0: #{tpu_custom_call.1}
  #allocation0 [shape = 'u32[]', space=smem, size = 0x4, offset = 0x4, fixed_abs, tag = 'smem constant byte address 0x4 - core index']
  #allocation1 [shape = 'u32[144,128]{1,0:T(1,128)}', space=vmem, size = 0x12000, scoped, tag = 'internal scratch']
  #allocation2 [shape = 's32[1]{0}', space=sflag, size = 0x4, scoped, tag = 'scoped memory for tpu_custom_call.1']
  #allocation3 [shape = 'u8[512]{0}', space=smem, size = 0x200, scoped, tag = 'prefetched SMEM operand 0']
  %s0 = inlined_call_operand.hbm [shape: f32[4], index: 0, kind: input, shape index: {}]
  %s1 = inlined_call_operand.hbm [shape: f32[4,4,512], index: 1, kind: input, shape index: {}]
  %s2 = inlined_call_operand.hbm [shape: f32[4,512], index: 2, kind: output, shape index: {}]
  %s3 = sld [smem:[#allocation0]]
  $region18: #{tpu_custom_call.1} parent=0
    _
  %s5 = ssub.s32 1, %s3
  %s6 = scalar_select 0, %s5, %s3
  %8 = dma.hbm_to_smem %s0, 16, [#allocation3], [#allocation2]
  %9 = dma.done [#allocation2], 16
  %10 = sfence
  $region1: #{tpu_custom_call.1} parent=0
    #allocation4 [shape = 'u8[32768]{0}', space=vmem, size = 0x8000, scoped, tag = 'input window, operand 1, single buffered']
    #allocation5 [shape = 's32[1]{0}', space=sflag, size = 0x4, scoped, tag = 'scoped memory for tpu_custom_call.1']
    #allocation6 [shape = 's32[1]{0}', space=sflag, size = 0x4, scoped, tag = 'scoped memory for tpu_custom_call.1']
    #allocation7 [shape = 'u8[8192]{0}', space=vmem, size = 0x2000, scoped, tag = 'output window, operand 0, single buffered']
    %11 = vsyncpa [#allocation5], 0
    %12 = vsyncpa [#allocation6], 0
    // Predicated region
    $region2: #{tpu_custom_call.1} parent=1 // pred_check
      _
    $region3: #{tpu_custom_call.1} parent=1 // pred_check_branch
      %14 = sbr.rel (0) target = $region5
    $region4: #{tpu_custom_call.1} parent=1 // pred_region
      %s16 = ssub.s32 1024, 1024
      %17 = vsyncadd [#allocation5], %s16
      %s18 = sshll.u32 [#allocation4], 4
      %s19 = int_to_ptr.vmem [resolvable:$true] %s18
      %24 = dma.hbm_to_vmem [thread:$0]  %s1, 1024, %s19, [#allocation5], 256, 256, 16
    $region5: #{tpu_custom_call.1} parent=1 // pred_fallthru
      _
    // Predicated region
    $region6: #{tpu_custom_call.1} parent=1 // pred_check
      _
    $region7: #{tpu_custom_call.1} parent=1 // pred_check_branch
      %26 = sbr.rel (0) target = $region9
    $region8: #{tpu_custom_call.1} parent=1 // pred_region
      %27 = dma.done [#allocation5], 1024
    $region9: #{tpu_custom_call.1} parent=1 // pred_fallthru
      _
    %v28 = vld [vmem:[#allocation4] sm:$0xff]
    %v29 = vld [vmem:[#allocation4 + $0x8] sm:$0xff]
    %s30 = sld [smem:[#allocation3]]
    %v31 = vstv %s30
    %v32 = vmul.f32 %v28, %v31
    %v33 = vmul.f32 %v29, %v31
    %34 = vst [vmem:[#allocation7] sm:$0xff] %v32
    %35 = vst [vmem:[#allocation7 + $0x8] sm:$0xff] %v33
    %v36 = vld [vmem:[#allocation7] sm:$0xff]
    %v37 = vld [vmem:[#allocation7 + $0x8] sm:$0xff]
    %s38 = scalar_lea.vmem [#allocation4], 16
    %v39 = vld [vmem:[%s38] sm:$0xff]
    %v40 = vld [vmem:[%s38 + $0x8] sm:$0xff]
    %s41 = sld [smem:[#allocation3 + $0x1]]
    %v42 = vstv %s41
    %v43 = vmul.f32 %v39, %v42
    %v44 = vmul.f32 %v40, %v42
    %v45 = vadd.f32 %v36, %v43
    %v46 = vadd.f32 %v37, %v44
    %47 = vst [vmem:[#allocation7] sm:$0xff] %v45
    %48 = vst [vmem:[#allocation7 + $0x8] sm:$0xff] %v46
    %v49 = vld [vmem:[#allocation7] sm:$0xff]
    %v50 = vld [vmem:[#allocation7 + $0x8] sm:$0xff]
    %s51 = scalar_lea.vmem [#allocation4], 32
    %v52 = vld [vmem:[%s51] sm:$0xff]
    %v53 = vld [vmem:[%s51 + $0x8] sm:$0xff]
    %s54 = sld [smem:[#allocation3 + $0x2]]
    %v55 = vstv %s54
    %v56 = vmul.f32 %v52, %v55
    %v57 = vmul.f32 %v53, %v55
    %v58 = vadd.f32 %v49, %v56
    %v59 = vadd.f32 %v50, %v57
    %60 = vst [vmem:[#allocation7] sm:$0xff] %v58
    %61 = vst [vmem:[#allocation7 + $0x8] sm:$0xff] %v59
    %v62 = vld [vmem:[#allocation7] sm:$0xff]
    %v63 = vld [vmem:[#allocation7 + $0x8] sm:$0xff]
    %s64 = scalar_lea.vmem [#allocation4], 48
    %v65 = vld [vmem:[%s64] sm:$0xff]
    %v66 = vld [vmem:[%s64 + $0x8] sm:$0xff]
    %s67 = sld [smem:[#allocation3 + $0x3]]
    %v68 = vstv %s67
    %v69 = vmul.f32 %v65, %v68
    %v70 = vmul.f32 %v66, %v68
    %v71 = vadd.f32 %v62, %v69
    %v72 = vadd.f32 %v63, %v70
    %73 = vst [vmem:[#allocation7] sm:$0xff] %v71
    %74 = vst [vmem:[#allocation7 + $0x8] sm:$0xff] %v72
    // Predicated region
    $region10: #{tpu_custom_call.1} parent=1 // pred_check
      _
    $region11: #{tpu_custom_call.1} parent=1 // pred_check_branch
      %76 = sbr.rel (0) target = $region13
    $region12: #{tpu_custom_call.1} parent=1 // pred_region
      %s78 = ssub.s32 256, 256
      %79 = vsyncadd [#allocation6], %s78
      %s81 = sshll.u32 [#allocation7], 4
      %s82 = int_to_ptr.vmem [resolvable:$true] %s81
      %84 = dma.vmem_to_hbm [thread:$0]  %s82, 256, %s2, [#allocation6]
    $region13: #{tpu_custom_call.1} parent=1 // pred_fallthru
      _
    // Predicated region
    $region14: #{tpu_custom_call.1} parent=1 // pred_check
      _
    $region15: #{tpu_custom_call.1} parent=1 // pred_check_branch
      %86 = sbr.rel (0) target = $region17
    $region16: #{tpu_custom_call.1} parent=1 // pred_region
      %87 = dma.done [#allocation6], 256
    $region17: #{tpu_custom_call.1} parent=1 // pred_fallthru
      _
    %88 = vsyncpa [#allocation5], 1
    %89 = vsyncpa [#allocation6], 1

</llo_original>
